<compile_context>
chip_gen: v6e
topology: v6e:2x2x1
jax: 0.10.0
libtpu: 0.0.40
codegen_flags: <defaults>
</compile_context>

<pallas_src>
import functools

import jax
import jax.numpy as jnp
from jax.experimental import pallas as pl
from jax.experimental.pallas import tpu as pltpu


# ---------------------------------------------------------------------------
# Kernels
# ---------------------------------------------------------------------------

def _attention_scale(sum_c, max_c, alpha, beta, w1t, b1, w2, b2, inv_hw):
    """conv_du as a tiny MLP on the pooled channel vector (VPU/XLU only, no MXU).

    sum_c/max_c: (C, 1) f32.  Returns the sigmoid scale (C, 1) f32.
    """
    y = alpha * (sum_c * inv_hw) + beta * max_c                          # (C, 1)
    z = jnp.sum(w1t * y, axis=0, keepdims=True) + b1                     # (1, Cmid)
    z = jnp.maximum(z, 0.0)
    s = jnp.sum(w2 * z, axis=1, keepdims=True) + b2                      # (C, 1)
    return 1.0 / (1.0 + jnp.exp(-s))                                     # sigmoid


def _fused_kernel(x_ref, ab_ref, w1t_ref, b1_ref, w2_ref, b2_ref, o_ref, *, inv_hw):
    """Single-pass kernel: one batch element, full (C, HW) tile resident in VMEM."""
    x = x_ref[0]                                                         # (C, HW)
    sum_c = jnp.sum(x, axis=1, keepdims=True, dtype=jnp.float32)         # f32 accumulate
    max_c = jnp.max(x, axis=1, keepdims=True).astype(jnp.float32)
    s = _attention_scale(sum_c, max_c, ab_ref[0], ab_ref[1],
                         w1t_ref[...], b1_ref[...], w2_ref[...], b2_ref[...], inv_hw)
    o_ref[0] = x * s.astype(o_ref.dtype)                                 # lane-dense store


def _partial_stats_kernel(x_ref, sum_ref, max_ref, *, tile_hw, hw, tpc, needs_mask):
    """Pass A: per-(n, chunk) partial sum / max over spatial tiles, accumulated in the
    (tiny) f32 output blocks.  Grid: (N, NCHUNK, TPC) with the tile axis 'arbitrary'."""
    t = pl.program_id(2)

    @pl.when(t == 0)
    def _():
        sum_ref[...] = jnp.zeros_like(sum_ref)
        max_ref[...] = jnp.full_like(max_ref, -jnp.inf)

    x = x_ref[0]                                                         # (C, tile_hw)
    if needs_mask:
        # Partial / fully-OOB last tile(s): mask pad lanes (0 for sum, -inf for max).
        start = (pl.program_id(1) * tpc + t) * tile_hw
        lane = jax.lax.broadcasted_iota(jnp.int32, (1, tile_hw), 1)
        valid = (start + lane) < hw
        x_sum = jnp.where(valid, x, jnp.zeros((), x.dtype))
        x_max = jnp.where(valid, x, jnp.full((), -jnp.inf, x.dtype))
    else:
        x_sum = x
        x_max = x

    sum_ref[0, 0] += jnp.sum(x_sum, axis=1, keepdims=True, dtype=jnp.float32)
    max_ref[0, 0] = jnp.maximum(
        max_ref[0, 0], jnp.max(x_max, axis=1, keepdims=True).astype(jnp.float32))


def _rescale_kernel(x_ref, psum_ref, pmax_ref, ab_ref, w1t_ref, b1_ref, w2_ref, b2_ref,
                    o_ref, *, inv_hw):
    """Pass B: combine per-chunk stats, run the tiny MLP, rescale one spatial tile.

    The stats combine + MLP is recomputed every tile (a few hundred VPU/EUP ops) so the
    kernel stays correct under any megacore split of the fully parallel (N, T) grid; it is
    hidden under the multi-MiB tile DMAs.
    """
    sum_c = jnp.sum(psum_ref[0], axis=0)                                 # (C, 1)
    max_c = jnp.max(pmax_ref[0], axis=0)                                 # (C, 1)
    s = _attention_scale(sum_c, max_c, ab_ref[0], ab_ref[1],
                         w1t_ref[...], b1_ref[...], w2_ref[...], b2_ref[...], inv_hw)
    o_ref[0] = x_ref[0] * s.astype(o_ref.dtype)


# ---------------------------------------------------------------------------
# Wrapper
# ---------------------------------------------------------------------------

def _round_up(x, m):
    return ((x + m - 1) // m) * m


def _vmem_limit_bytes():
    """Generation-aware scoped-VMEM request (leave ~25% physical headroom)."""
    cap = 64 * 1024 * 1024          # conservative default = v7x physical VMEM per TC
    try:
        info = pltpu.get_tpu_info()
        cap = int(getattr(info, "vmem_capacity_bytes", cap))
    except Exception:               # pragma: no cover - query unavailable
        pass
    return max(32 * 1024 * 1024, (cap * 3) // 4)


@functools.partial(jax.jit, static_argnames=("force_tiled", "tile_hw_override"))
def calayer_mixab_pallas(x, alpha, beta, w1, b1, w2, b2, *,
                         force_tiled=False, tile_hw_override=None):
    """x: (N, C, H, W); w1: (Cmid, C, 1, 1); b1: (Cmid,); w2: (C, Cmid, 1, 1); b2: (C,)."""
    N, C, H, W = x.shape
    HW = H * W
    Cmid = w1.shape[0]
    dtype = x.dtype
    itemsize = jnp.dtype(dtype).itemsize
    inv_hw = 1.0 / HW

    xr = x.reshape(N, C, HW)                                             # free reshape, HW on lanes
    ab = jnp.stack([jnp.asarray(alpha, jnp.float32).reshape(()),
                    jnp.asarray(beta, jnp.float32).reshape(())])         # (2,) -> SMEM scalars
    w1t = jnp.transpose(w1.reshape(Cmid, C)).astype(jnp.float32)         # (C, Cmid), tiny
    b1k = b1.reshape(1, Cmid).astype(jnp.float32)
    w2k = w2.reshape(C, Cmid).astype(jnp.float32)                        # (C, Cmid)
    b2k = b2.reshape(C, 1).astype(jnp.float32)
    smem_spec = pl.BlockSpec(memory_space=pltpu.MemorySpace.SMEM)

    # --- generation-aware VMEM budgeting ------------------------------------------------
    vmem_limit = _vmem_limit_bytes()                  # ~96 MiB on v5e/v6e, ~48 MiB on v7x
    weight_headroom = 2 * 1024 * 1024
    # Fused path holds a (1, C, HW) input block AND output block, each double-buffered.
    fused_block_limit = (vmem_limit - weight_headroom) // 4

    block_bytes = C * HW * itemsize

    # Tiled path: size the spatial tile by bytes (~8 MiB target) to amortize the ~0.35 us
    # per-grid-step overhead; 2x-in + 2x-out tile buffers always fit the budget.
    target_tile_bytes = min(8 * 1024 * 1024, fused_block_limit)
    if tile_hw_override is not None:
        tile_hw = int(tile_hw_override)
    else:
        tile_hw = max(128, (target_tile_bytes // (C * itemsize)) // 128 * 128)
    tile_hw = min(tile_hw, _round_up(HW, 128))

    use_fused = (not force_tiled) and (block_bytes <= fused_block_limit)
    if tile_hw >= HW:                         # tiling degenerates to a single tile
        use_fused = True

    if use_fused:
        # TODO(synk): for N=1 on v7x the fused path only feeds one TensorCore; such images
        # are small (<= ~11 MiB) so the extra split is not worth the complexity.
        out = pl.pallas_call(
            functools.partial(_fused_kernel, inv_hw=inv_hw),
            out_shape=jax.ShapeDtypeStruct((N, C, HW), dtype),
            grid_spec=pltpu.PrefetchScalarGridSpec(
                num_scalar_prefetch=0,
                grid=(N,),
                in_specs=[
                    pl.BlockSpec((1, C, HW), lambda n: (n, 0, 0)),       # x, one batch element
                    smem_spec,                                            # [alpha, beta]
                    pl.BlockSpec((C, Cmid), lambda n: (0, 0)),            # W1^T
                    pl.BlockSpec((1, Cmid), lambda n: (0, 0)),            # b1
                    pl.BlockSpec((C, Cmid), lambda n: (0, 0)),            # W2
                    pl.BlockSpec((C, 1), lambda n: (0, 0)),               # b2
                ],
                out_specs=pl.BlockSpec((1, C, HW), lambda n: (n, 0, 0)),
            ),
            compiler_params=pltpu.CompilerParams(
                dimension_semantics=("parallel",),
                vmem_limit_bytes=vmem_limit),
        )(xr, ab, w1t, b1k, w2k, b2k)
        return out.reshape(N, C, H, W)

    # --- Tiled two-pass pipeline (large spatial extents) --------------------------------
    T = -(-HW // tile_hw)                       # cdiv; >= 2 here
    NCHUNK = 2 if T >= 2 else 1                 # feeds both v7x TensorCores even for N=1
    TPC = -(-T // NCHUNK)                       # tiles per chunk
    needs_mask = (NCHUNK * TPC * tile_hw != HW)
    needs_clamp = (NCHUNK * TPC != T)

    if needs_clamp:
        def x_map_a(n, c, t, _tpc=TPC, _tmax=T - 1):
            return (n, 0, jnp.minimum(c * _tpc + t, _tmax))
    else:
        def x_map_a(n, c, t, _tpc=TPC):
            return (n, 0, c * _tpc + t)

    # Pass A: per-(n, chunk) partial sum / max, accumulated in the tiny f32 outputs.
    part_sum, part_max = pl.pallas_call(
        functools.partial(_partial_stats_kernel, tile_hw=tile_hw, hw=HW,
                          tpc=TPC, needs_mask=needs_mask),
        out_shape=(jax.ShapeDtypeStruct((N, NCHUNK, C, 1), jnp.float32),
                   jax.ShapeDtypeStruct((N, NCHUNK, C, 1), jnp.float32)),
        grid_spec=pltpu.PrefetchScalarGridSpec(
            num_scalar_prefetch=0,
            grid=(N, NCHUNK, TPC),
            in_specs=[pl.BlockSpec((1, C, tile_hw), x_map_a)],
            out_specs=[
                pl.BlockSpec((1, 1, C, 1), lambda n, c, t: (n, c, 0, 0)),
                pl.BlockSpec((1, 1, C, 1), lambda n, c, t: (n, c, 0, 0)),
            ],
        ),
        compiler_params=pltpu.CompilerParams(
            dimension_semantics=("parallel", "parallel", "arbitrary"),
            vmem_limit_bytes=vmem_limit),
    )(xr)

    # Pass B: stream spatial tiles, combine stats + MLP + sigmoid, multiply.  Fully
    # parallel (N, T) grid -> both TensorCores busy on v7x even for N=1.
    out = pl.pallas_call(
        functools.partial(_rescale_kernel, inv_hw=inv_hw),
        out_shape=jax.ShapeDtypeStruct((N, C, HW), dtype),
        grid_spec=pltpu.PrefetchScalarGridSpec(
            num_scalar_prefetch=0,
            grid=(N, T),
            in_specs=[
                pl.BlockSpec((1, C, tile_hw), lambda n, t: (n, 0, t)),
                pl.BlockSpec((1, NCHUNK, C, 1), lambda n, t: (n, 0, 0, 0)),
                pl.BlockSpec((1, NCHUNK, C, 1), lambda n, t: (n, 0, 0, 0)),
                smem_spec,
                pl.BlockSpec((C, Cmid), lambda n, t: (0, 0)),
                pl.BlockSpec((1, Cmid), lambda n, t: (0, 0)),
                pl.BlockSpec((C, Cmid), lambda n, t: (0, 0)),
                pl.BlockSpec((C, 1), lambda n, t: (0, 0)),
            ],
            out_specs=pl.BlockSpec((1, C, tile_hw), lambda n, t: (n, 0, t)),
        ),
        compiler_params=pltpu.CompilerParams(
            dimension_semantics=("parallel", "parallel"),
            vmem_limit_bytes=vmem_limit),
    )(xr, part_sum, part_max, ab, w1t, b1k, w2k, b2k)
    return out.reshape(N, C, H, W)


# ---------------------------------------------------------------------------
# Pure-JAX reference (mirrors the PyTorch forward)
# ---------------------------------------------------------------------------

def calayer_mixab_reference(x, alpha, beta, w1, b1, w2, b2):
    N, C, H, W = x.shape
    Cmid = w1.shape[0]
    avg = jnp.mean(x, axis=(2, 3), keepdims=True)                        # (N, C, 1, 1)
    mx = jnp.max(x, axis=(2, 3), keepdims=True)                          # (N, C, 1, 1)
    y = alpha * avg + beta * mx
    z = jnp.einsum("oc,ncij->noij", w1.reshape(Cmid, C), y) + b1.reshape(1, Cmid, 1, 1)
    z = jnp.maximum(z, 0.0)
    s = jnp.einsum("oc,ncij->noij", w2.reshape(C, Cmid), z) + b2.reshape(1, C, 1, 1)
    s = jax.nn.sigmoid(s)
    return x * s


if __name__ == "__main__":
    # Small shapes consistent with the module: channel must be >= reduction.
    N, C, H, W = 2, 32, 16, 16
    reduction = 16
    Cmid = C // reduction

    key = jax.random.PRNGKey(0)
    kx, k1, k2, k3, k4 = jax.random.split(key, 5)

    x = jax.random.normal(kx, (N, C, H, W), jnp.float32)

    # Parameters follow the module's __init__ (alpha = beta = 1.0 at init).
    alpha = jnp.float32(1.0)
    beta = jnp.float32(1.0)
    w1 = 0.1 * jax.random.normal(k1, (Cmid, C, 1, 1), jnp.float32)
    b1 = 0.1 * jax.random.normal(k2, (Cmid,), jnp.float32)
    w2 = 0.1 * jax.random.normal(k3, (C, Cmid, 1, 1), jnp.float32)
    b2 = 0.1 * jax.random.normal(k4, (C,), jnp.float32)

    ref = calayer_mixab_reference(x, alpha, beta, w1, b1, w2, b2)

    # 1) Fused single-pass path (small spatial extent -> one read + one write of x).
    out_fused = jax.block_until_ready(
        calayer_mixab_pallas(x, alpha, beta, w1, b1, w2, b2))
    assert out_fused.shape == x.shape and out_fused.dtype == x.dtype
    assert jnp.allclose(out_fused, ref, atol=1e-5, rtol=1e-5), \
        float(jnp.max(jnp.abs(out_fused - ref)))

    # 2) Tiled two-pass path (what large images use); force it with a small spatial tile.
    out_tiled = jax.block_until_ready(
        calayer_mixab_pallas(x, alpha, beta, w1, b1, w2, b2,
                             force_tiled=True, tile_hw_override=128))
    assert out_tiled.shape == x.shape and out_tiled.dtype == x.dtype
    assert jnp.allclose(out_tiled, ref, atol=1e-5, rtol=1e-5), \
        float(jnp.max(jnp.abs(out_tiled - ref)))

    # 3) Tiled path with HW not a multiple of 128 -> exercises the masked partial tile.
    x2 = jax.random.normal(kx, (N, C, 15, 15), jnp.float32)
    ref2 = calayer_mixab_reference(x2, alpha, beta, w1, b1, w2, b2)
    out2 = jax.block_until_ready(
        calayer_mixab_pallas(x2, alpha, beta, w1, b1, w2, b2,
                             force_tiled=True, tile_hw_override=128))
    assert out2.shape == x2.shape and out2.dtype == x2.dtype
    assert jnp.allclose(out2, ref2, atol=1e-5, rtol=1e-5), \
        float(jnp.max(jnp.abs(out2 - ref2)))

    print("KERNEL_OK")
</pallas_src>

<mosaic_0001>
module attributes {stable_mosaic.version = 11 : i64} {
  func.func @_fused_kernel(%arg0: i32, %arg1: memref<1x32x256xf32, #tpu.memory_space<vmem>>, %arg2: memref<2xf32, #tpu.memory_space<smem>>, %arg3: memref<32x2xf32, #tpu.memory_space<vmem>>, %arg4: memref<1x2xf32, #tpu.memory_space<vmem>>, %arg5: memref<32x2xf32, #tpu.memory_space<vmem>>, %arg6: memref<32x1xf32, #tpu.memory_space<vmem>>, %arg7: memref<1x32x256xf32, #tpu.memory_space<vmem>>) attributes {dimension_semantics = [#tpu.dimension_semantics<parallel>], iteration_bounds = array<i64: 2>, scalar_prefetch = 0 : i64, scratch_operands = 0 : i64, tpu.core_type = #tpu.core_type<tc>, window_params = [{transform_indices = @transform_0, window_bounds = array<i64: 1, 32, 256>}, {transform_indices = @transform_1, window_bounds = array<i64: 2>}, {pipeline_mode = #tpu.pipeline_mode<synchronous>, transform_indices = @transform_2, window_bounds = array<i64: 32, 2>}, {pipeline_mode = #tpu.pipeline_mode<synchronous>, transform_indices = @transform_3, window_bounds = array<i64: 1, 2>}, {pipeline_mode = #tpu.pipeline_mode<synchronous>, transform_indices = @transform_4, window_bounds = array<i64: 32, 2>}, {pipeline_mode = #tpu.pipeline_mode<synchronous>, transform_indices = @transform_5, window_bounds = array<i64: 32, 1>}, {transform_indices = @transform_6, window_bounds = array<i64: 1, 32, 256>}]} {
    %c0 = arith.constant 0 : index
    %c0_0 = arith.constant 0 : index
    %c0_1 = arith.constant 0 : index
    %0 = vector.load %arg1[%c0, %c0_0, %c0_1] : memref<1x32x256xf32, #tpu.memory_space<vmem>>, vector<1x32x256xf32>
    %1 = vector.shape_cast %0 : vector<1x32x256xf32> to vector<32x256xf32>
    %cst = arith.constant dense<0.000000e+00> : vector<32xf32>
    %2 = vector.multi_reduction <add>, %1, %cst [1] : vector<32x256xf32> to vector<32xf32>
    %3 = vector.shape_cast %2 : vector<32xf32> to vector<32x1xf32>
    %cst_2 = arith.constant dense<0xFF800000> : vector<32xf32>
    %4 = vector.multi_reduction <maximumf>, %1, %cst_2 [1] : vector<32x256xf32> to vector<32xf32>
    %5 = vector.shape_cast %4 : vector<32xf32> to vector<32x1xf32>
    %c0_3 = arith.constant 0 : index
    %6 = memref.load %arg2[%c0_3] : memref<2xf32, #tpu.memory_space<smem>>
    %c1 = arith.constant 1 : index
    %7 = memref.load %arg2[%c1] : memref<2xf32, #tpu.memory_space<smem>>
    %c0_4 = arith.constant 0 : index
    %c0_5 = arith.constant 0 : index
    %8 = vector.load %arg3[%c0_4, %c0_5] : memref<32x2xf32, #tpu.memory_space<vmem>>, vector<32x2xf32>
    %c0_6 = arith.constant 0 : index
    %c0_7 = arith.constant 0 : index
    %9 = vector.load %arg4[%c0_6, %c0_7] : memref<1x2xf32, #tpu.memory_space<vmem>>, vector<1x2xf32>
    %c0_8 = arith.constant 0 : index
    %c0_9 = arith.constant 0 : index
    %10 = vector.load %arg5[%c0_8, %c0_9] : memref<32x2xf32, #tpu.memory_space<vmem>>, vector<32x2xf32>
    %c0_10 = arith.constant 0 : index
    %c0_11 = arith.constant 0 : index
    %11 = vector.load %arg6[%c0_10, %c0_11] : memref<32x1xf32, #tpu.memory_space<vmem>>, vector<32x1xf32>
    %cst_12 = arith.constant 3.906250e-03 : f32
    %12 = vector.broadcast %cst_12 : f32 to vector<32x1xf32>
    %13 = arith.mulf %3, %12 : vector<32x1xf32>
    %14 = vector.broadcast %6 : f32 to vector<32x1xf32>
    %15 = arith.mulf %14, %13 : vector<32x1xf32>
    %16 = vector.broadcast %7 : f32 to vector<32x1xf32>
    %17 = arith.mulf %16, %5 : vector<32x1xf32>
    %18 = arith.addf %15, %17 : vector<32x1xf32>
    %19 = vector.broadcast %18 : vector<32x1xf32> to vector<32x2xf32>
    %20 = arith.mulf %8, %19 : vector<32x2xf32>
    %cst_13 = arith.constant dense<0.000000e+00> : vector<2xf32>
    %21 = vector.multi_reduction <add>, %20, %cst_13 [0] : vector<32x2xf32> to vector<2xf32>
    %22 = vector.shape_cast %21 : vector<2xf32> to vector<1x2xf32>
    %23 = arith.addf %22, %9 : vector<1x2xf32>
    %cst_14 = arith.constant 0.000000e+00 : f32
    %24 = vector.broadcast %cst_14 : f32 to vector<1x2xf32>
    %25 = arith.maximumf %23, %24 : vector<1x2xf32>
    %26 = vector.broadcast %25 : vector<1x2xf32> to vector<32x2xf32>
    %27 = arith.mulf %10, %26 : vector<32x2xf32>
    %cst_15 = arith.constant dense<0.000000e+00> : vector<32xf32>
    %28 = vector.multi_reduction <add>, %27, %cst_15 [1] : vector<32x2xf32> to vector<32xf32>
    %29 = vector.shape_cast %28 : vector<32xf32> to vector<32x1xf32>
    %30 = arith.addf %29, %11 : vector<32x1xf32>
    %cst_16 = arith.constant 0.000000e+00 : f32
    %31 = vector.broadcast %cst_16 : f32 to vector<32x1xf32>
    %32 = arith.subf %31, %30 : vector<32x1xf32>
    %33 = math.exp %32 : vector<32x1xf32>
    %cst_17 = arith.constant 1.000000e+00 : f32
    %34 = vector.broadcast %cst_17 : f32 to vector<32x1xf32>
    %35 = arith.addf %34, %33 : vector<32x1xf32>
    %cst_18 = arith.constant 1.000000e+00 : f32
    %36 = vector.broadcast %cst_18 : f32 to vector<32x1xf32>
    %37 = arith.divf %36, %35 : vector<32x1xf32>
    %38 = vector.broadcast %37 : vector<32x1xf32> to vector<32x256xf32>
    %39 = arith.mulf %1, %38 : vector<32x256xf32>
    %c0_19 = arith.constant 0 : index
    %c0_20 = arith.constant 0 : index
    %c0_21 = arith.constant 0 : index
    %40 = vector.load %arg7[%c0_19, %c0_20, %c0_21] : memref<1x32x256xf32, #tpu.memory_space<vmem>>, vector<1x32x256xf32>
    %41 = vector.shape_cast %40 : vector<1x32x256xf32> to vector<32x256xf32>
    %42 = vector.shape_cast %39 : vector<32x256xf32> to vector<1x32x256xf32>
    tpu.vector_store %arg7[%c0_19, %c0_20, %c0_21], %42 {strides = array<i32>} : memref<1x32x256xf32, #tpu.memory_space<vmem>>, vector<1x32x256xf32>,
    return
  }
  func.func @transform_0(%arg0: i32) -> (i32, i32, i32) {
    %c0_i32 = arith.constant 0 : i32
    %c0_i32_0 = arith.constant 0 : i32
    %c0_i32_1 = arith.constant 0 : i32
    return %arg0, %c0_i32, %c0_i32_0 : i32, i32, i32
  }
  func.func @transform_1(%arg0: i32) -> i32 {
    %c0_i32 = arith.constant 0 : i32
    %c0_i32_0 = arith.constant 0 : i32
    return %c0_i32 : i32
  }
  func.func @transform_2(%arg0: i32) -> (i32, i32) {
    %c0_i32 = arith.constant 0 : i32
    %c0_i32_0 = arith.constant 0 : i32
    %c0_i32_1 = arith.constant 0 : i32
    return %c0_i32, %c0_i32_0 : i32, i32
  }
  func.func @transform_3(%arg0: i32) -> (i32, i32) {
    %c0_i32 = arith.constant 0 : i32
    %c0_i32_0 = arith.constant 0 : i32
    %c0_i32_1 = arith.constant 0 : i32
    return %c0_i32, %c0_i32_0 : i32, i32
  }
  func.func @transform_4(%arg0: i32) -> (i32, i32) {
    %c0_i32 = arith.constant 0 : i32
    %c0_i32_0 = arith.constant 0 : i32
    %c0_i32_1 = arith.constant 0 : i32
    return %c0_i32, %c0_i32_0 : i32, i32
  }
  func.func @transform_5(%arg0: i32) -> (i32, i32) {
    %c0_i32 = arith.constant 0 : i32
    %c0_i32_0 = arith.constant 0 : i32
    %c0_i32_1 = arith.constant 0 : i32
    return %c0_i32, %c0_i32_0 : i32, i32
  }
  func.func @transform_6(%arg0: i32) -> (i32, i32, i32) {
    %c0_i32 = arith.constant 0 : i32
    %c0_i32_0 = arith.constant 0 : i32
    %c0_i32_1 = arith.constant 0 : i32
    return %arg0, %c0_i32, %c0_i32_0 : i32, i32, i32
  }
}

</mosaic_0001>

<llo_original>
// kernel: calayer_mixab_pallas.1
$region0: #{calayer_mixab_pallas.1}
  #allocation0 [shape = 'u32[]', space=smem, size = 0x4, offset = 0x4, fixed_abs, tag = 'smem constant byte address 0x4 - core index']
  #allocation1 [shape = 'u32[144,128]{1,0:T(1,128)}', space=vmem, size = 0x12000, scoped, tag = 'internal scratch']
  %s0 = inlined_call_operand.vmem [shape: f32[2,32,256], index: 0, kind: input, shape index: {}]
  %s1 = inlined_call_operand.vmem [shape: f32[2], index: 1, kind: input, shape index: {}]
  %s2 = inlined_call_operand.vmem [shape: f32[32,2], index: 2, kind: input, shape index: {}]
  %s3 = inlined_call_operand.vmem [shape: f32[1,2], index: 3, kind: input, shape index: {}]
  %s4 = inlined_call_operand.vmem [shape: f32[32,2], index: 4, kind: input, shape index: {}]
  %s5 = inlined_call_operand.vmem [shape: f32[32,1], index: 5, kind: input, shape index: {}]
  %s6 = inlined_call_operand.vmem [shape: f32[2,32,256], index: 6, kind: output, shape index: {}]
  %s7 = sld [smem:[#allocation0]]
  $region61: #{calayer_mixab_pallas.1} parent=0
    _
  %s9 = ssub.s32 1, %s7
  %s10 = scalar_select 0, %s9, %s7
  $region1: #{calayer_mixab_pallas.1} parent=0
    #allocation2 [shape = 'u8[512]{0}', space=smem, size = 0x200, scoped, tag = 'input window, operand 1, single buffered']
    #allocation3 [shape = 's32[2]{0}', space=sflag, size = 0x8, scoped, tag = 'scoped memory for calayer_mixab_pallas.1']
    %11 = vsyncpa [#allocation3], 0
    loop: start=0, step=1, limit=4
    $region2: #{calayer_mixab_pallas.1} parent=1 // loop_pre_header
      _
    $region3: #{calayer_mixab_pallas.1} parent=1 // loop_header
      %s13 = sphi 0, %s17
      %p14 = scmp.ge.s32.totalorder %s13, 4
      %s23 = sphi 0, %s25
      %s26 = sphi 0, %s23
      %s27 = sphi 0, %s26
      %s43 = sphi 0, %s27
      %s47 = sphi 0, %s47
      %s49 = sphi 0, %s47
      %s50 = sphi 0, %s49
      %s64 = sphi 0, %s50
      %s68 = sphi 0, %s68
      %s70 = sphi 0, %s68
      %s71 = sphi 0, %s70
      %s85 = sphi 0, %s71
      %s89 = sphi 0, %s89
      %s91 = sphi 0, %s89
      %s92 = sphi 0, %s91
      %s106 = sphi 0, %s92
      %s110 = sphi 0, %s110
      %s112 = sphi 0, %s110
      %s113 = sphi 0, %s112
      %s127 = sphi 0, %s113
      %s131 = sphi 0, %s131
      %s133 = sphi 0, %s131
      %s134 = sphi 0, %s133
      %s148 = sphi 0, %s134
      %s154 = sphi 0, %s156
      %s157 = sphi 0, %s154
      %s158 = sphi 0, %s157
      %s174 = sphi 0, %s158
    $region4: #{calayer_mixab_pallas.1} parent=1 // loop_header_branch
      %16 = sbr.rel (%p14) target = $region8
    $region5: #{calayer_mixab_pallas.1} parent=1 // loop_body
      %s18 = ssub.s32 %s13, 1
      %s19 = ssub.s32 %s13, 2
      %s20 = sadd.s32 %s13, 1
      %s21 = ssub.s32 %s13, %s20
      %p22 = scmp.eq.s32.totalorder %s21, 0
      %s24 = sadd.s32 %s23, 1
      %s25 = scalar_select %p22, %s23, %s24
      %p28 = pneg %p22
      %p29 = scmp.eq.s32.totalorder %s13, 1
      %p30 = por %p28, %p29
      %p31 = scmp.ne.s32.totalorder %s23, %s26
      %p32 = scmp.eq.s32.totalorder %s13, 0
      %p33 = por %p31, %p32
      %p34 = scmp.ne.s32.totalorder %s23, %s26
      %p35 = scmp.eq.s32.totalorder %s18, 1
      %p36 = por %p34, %p35
      %p37 = scmp.ne.s32.totalorder %s26, %s27
      %p38 = scmp.eq.s32.totalorder %s18, 0
      %p39 = por %p37, %p38
      %p40 = scmp.ne.s32.totalorder %s26, %s27
      %p41 = scmp.eq.s32.totalorder %s19, 1
      %p42 = por %p40, %p41
      %p44 = scmp.ne.s32.totalorder %s27, %s43
      %p45 = scmp.eq.s32.totalorder %s19, 0
      %p46 = por %p44, %p45
      %s48 = sadd.s32 %s47, 1
      %p51 = scmp.eq.s32.totalorder %s13, 1
      %p52 = scmp.ne.s32.totalorder %s47, %s49
      %p53 = scmp.eq.s32.totalorder %s13, 0
      %p54 = por %p52, %p53
      %p55 = scmp.ne.s32.totalorder %s47, %s49
      %p56 = scmp.eq.s32.totalorder %s18, 1
      %p57 = por %p55, %p56
      %p58 = scmp.ne.s32.totalorder %s49, %s50
      %p59 = scmp.eq.s32.totalorder %s18, 0
      %p60 = por %p58, %p59
      %p61 = scmp.ne.s32.totalorder %s49, %s50
      %p62 = scmp.eq.s32.totalorder %s19, 1
      %p63 = por %p61, %p62
      %p65 = scmp.ne.s32.totalorder %s50, %s64
      %p66 = scmp.eq.s32.totalorder %s19, 0
      %p67 = por %p65, %p66
      %s69 = sadd.s32 %s68, 1
      %p72 = scmp.eq.s32.totalorder %s13, 1
      %p73 = scmp.ne.s32.totalorder %s68, %s70
      %p74 = scmp.eq.s32.totalorder %s13, 0
      %p75 = por %p73, %p74
      %p76 = scmp.ne.s32.totalorder %s68, %s70
      %p77 = scmp.eq.s32.totalorder %s18, 1
      %p78 = por %p76, %p77
      %p79 = scmp.ne.s32.totalorder %s70, %s71
      %p80 = scmp.eq.s32.totalorder %s18, 0
      %p81 = por %p79, %p80
      %p82 = scmp.ne.s32.totalorder %s70, %s71
      %p83 = scmp.eq.s32.totalorder %s19, 1
      %p84 = por %p82, %p83
      %p86 = scmp.ne.s32.totalorder %s71, %s85
      %p87 = scmp.eq.s32.totalorder %s19, 0
      %p88 = por %p86, %p87
      %s90 = sadd.s32 %s89, 1
      %p93 = scmp.eq.s32.totalorder %s13, 1
      %p94 = scmp.ne.s32.totalorder %s89, %s91
      %p95 = scmp.eq.s32.totalorder %s13, 0
      %p96 = por %p94, %p95
      %p97 = scmp.ne.s32.totalorder %s89, %s91
      %p98 = scmp.eq.s32.totalorder %s18, 1
      %p99 = por %p97, %p98
      %p100 = scmp.ne.s32.totalorder %s91, %s92
      %p101 = scmp.eq.s32.totalorder %s18, 0
      %p102 = por %p100, %p101
      %p103 = scmp.ne.s32.totalorder %s91, %s92
      %p104 = scmp.eq.s32.totalorder %s19, 1
      %p105 = por %p103, %p104
      %p107 = scmp.ne.s32.totalorder %s92, %s106
      %p108 = scmp.eq.s32.totalorder %s19, 0
      %p109 = por %p107, %p108
      %s111 = sadd.s32 %s110, 1
      %p114 = scmp.eq.s32.totalorder %s13, 1
      %p115 = scmp.ne.s32.totalorder %s110, %s112
      %p116 = scmp.eq.s32.totalorder %s13, 0
      %p117 = por %p115, %p116
      %p118 = scmp.ne.s32.totalorder %s110, %s112
      %p119 = scmp.eq.s32.totalorder %s18, 1
      %p120 = por %p118, %p119
      %p121 = scmp.ne.s32.totalorder %s112, %s113
      %p122 = scmp.eq.s32.totalorder %s18, 0
      %p123 = por %p121, %p122
      %p124 = scmp.ne.s32.totalorder %s112, %s113
      %p125 = scmp.eq.s32.totalorder %s19, 1
      %p126 = por %p124, %p125
      %p128 = scmp.ne.s32.totalorder %s113, %s127
      %p129 = scmp.eq.s32.totalorder %s19, 0
      %p130 = por %p128, %p129
      %s132 = sadd.s32 %s131, 1
      %p135 = scmp.eq.s32.totalorder %s13, 1
      %p136 = scmp.ne.s32.totalorder %s131, %s133
      %p137 = scmp.eq.s32.totalorder %s13, 0
      %p138 = por %p136, %p137
      %p139 = scmp.ne.s32.totalorder %s131, %s133
      %p140 = scmp.eq.s32.totalorder %s18, 1
      %p141 = por %p139, %p140
      %p142 = scmp.ne.s32.totalorder %s133, %s134
      %p143 = scmp.eq.s32.totalorder %s18, 0
      %p144 = por %p142, %p143
      %p145 = scmp.ne.s32.totalorder %s133, %s134
      %p146 = scmp.eq.s32.totalorder %s19, 1
      %p147 = por %p145, %p146
      %p149 = scmp.ne.s32.totalorder %s134, %s148
      %p150 = scmp.eq.s32.totalorder %s19, 0
      %p151 = por %p149, %p150
      %s152 = ssub.s32 %s13, %s20
      %p153 = scmp.eq.s32.totalorder %s152, 0
      %s155 = sadd.s32 %s154, 1
      %s156 = scalar_select %p153, %s154, %s155
      %p159 = pneg %p153
      %p160 = scmp.eq.s32.totalorder %s13, 1
      %p161 = por %p159, %p160
      %p162 = scmp.ne.s32.totalorder %s154, %s157
      %p163 = scmp.eq.s32.totalorder %s13, 0
      %p164 = por %p162, %p163
      %p165 = scmp.ne.s32.totalorder %s154, %s157
      %p166 = scmp.eq.s32.totalorder %s18, 1
      %p167 = por %p165, %p166
      %p168 = scmp.ne.s32.totalorder %s157, %s158
      %p169 = scmp.eq.s32.totalorder %s18, 0
      %p170 = por %p168, %p169
      %p171 = scmp.ne.s32.totalorder %s157, %s158
      %p172 = scmp.eq.s32.totalorder %s19, 1
      %p173 = por %p171, %p172
      %p175 = scmp.ne.s32.totalorder %s158, %s174
      %p176 = scmp.eq.s32.totalorder %s19, 0
      %p177 = por %p175, %p176
      %p178 = scmp.le.s32.totalorder 1, %s13
      %p179 = scmp.lt.s32.totalorder %s13, 3
      %p180 = pnand %p178, %p179
      %p181 = pneg %p180
      // Predicated region
      $region9: #{calayer_mixab_pallas.1} parent=5 // pred_check
        _
      $region10: #{calayer_mixab_pallas.1} parent=5 // pred_check_branch
        %183 = sbr.rel (%p180) target = $region12
      $region11: #{calayer_mixab_pallas.1} parent=5 // pred_region
        %s184 = ssub.s32 %s13, 1
        // Predicated region
        $region13: #{calayer_mixab_pallas.1} parent=11 // pred_check
          %p185 = pneg %p60
        $region14: #{calayer_mixab_pallas.1} parent=11 // pred_check_branch
          %187 = sbr.rel (%p185) target = $region16
        $region15: #{calayer_mixab_pallas.1} parent=11 // pred_region
          %s189 = ssub.s32 16, 16
          %190 = vsyncadd [#allocation3], %s189
          %s192 = sshll.u32 %s1, 4
          %s193 = int_to_ptr.vmem [resolvable:$true] %s192
          %195 = dma.vmem_to_smem %s193, 16, [#allocation2], [#allocation3]
        $region16: #{calayer_mixab_pallas.1} parent=11 // pred_fallthru
          _
        // Predicated region
        $region17: #{calayer_mixab_pallas.1} parent=11 // pred_check
          %p196 = pneg %p81
        $region18: #{calayer_mixab_pallas.1} parent=11 // pred_check_branch
          %198 = sbr.rel (%p196) target = $region20
        $region19: #{calayer_mixab_pallas.1} parent=11 // pred_region
          _
        $region20: #{calayer_mixab_pallas.1} parent=11 // pred_fallthru
          _
        // Predicated region
        $region21: #{calayer_mixab_pallas.1} parent=11 // pred_check
          %p199 = pneg %p102
        $region22: #{calayer_mixab_pallas.1} parent=11 // pred_check_branch
          %201 = sbr.rel (%p199) target = $region24
        $region23: #{calayer_mixab_pallas.1} parent=11 // pred_region
          _
        $region24: #{calayer_mixab_pallas.1} parent=11 // pred_fallthru
          _
        // Predicated region
        $region25: #{calayer_mixab_pallas.1} parent=11 // pred_check
          %p202 = pneg %p123
        $region26: #{calayer_mixab_pallas.1} parent=11 // pred_check_branch
          %204 = sbr.rel (%p202) target = $region28
        $region27: #{calayer_mixab_pallas.1} parent=11 // pred_region
          _
        $region28: #{calayer_mixab_pallas.1} parent=11 // pred_fallthru
          _
        // Predicated region
        $region29: #{calayer_mixab_pallas.1} parent=11 // pred_check
          %p205 = pneg %p144
        $region30: #{calayer_mixab_pallas.1} parent=11 // pred_check_branch
          %207 = sbr.rel (%p205) target = $region32
        $region31: #{calayer_mixab_pallas.1} parent=11 // pred_region
          _
        $region32: #{calayer_mixab_pallas.1} parent=11 // pred_fallthru
          _
      $region12: #{calayer_mixab_pallas.1} parent=5 // pred_fallthru
        _
      %p208 = scmp.lt.s32.totalorder %s13, 2
      // Predicated region
      $region33: #{calayer_mixab_pallas.1} parent=5 // pred_check
        %p209 = pneg %p208
      $region34: #{calayer_mixab_pallas.1} parent=5 // pred_check_branch
        %211 = sbr.rel (%p209) target = $region36
      $region35: #{calayer_mixab_pallas.1} parent=5 // pred_region
        // Predicated region
        $region37: #{calayer_mixab_pallas.1} parent=35 // pred_check
          %p212 = pneg %p33
        $region38: #{calayer_mixab_pallas.1} parent=35 // pred_check_branch
          %214 = sbr.rel (%p212) target = $region40
        $region39: #{calayer_mixab_pallas.1} parent=35 // pred_region
          %p215 = scmp.lt.s32.totalorder %s13, 1
          %s216 = scalar_select %p215, %s13, 1
          %s217 = smul.addr %s216, 8
          %s218 = smul.addr %s217, 8
          %s219 = scalar_lea.vmem %s0, %s218
        $region40: #{calayer_mixab_pallas.1} parent=35 // pred_fallthru
          _
      $region36: #{calayer_mixab_pallas.1} parent=5 // pred_fallthru
        _
      %p220 = scmp.le.s32.totalorder 1, %s13
      %p221 = scmp.lt.s32.totalorder %s13, 3
      %p222 = pnand %p220, %p221
      %p223 = pneg %p222
      // Predicated region
      $region41: #{calayer_mixab_pallas.1} parent=5 // pred_check
        _
      $region42: #{calayer_mixab_pallas.1} parent=5 // pred_check_branch
        %225 = sbr.rel (%p222) target = $region44
      $region43: #{calayer_mixab_pallas.1} parent=5 // pred_region
        %s226 = ssub.s32 %s13, 1
        // Predicated region
        $region45: #{calayer_mixab_pallas.1} parent=43 // pred_check
          %p227 = pneg %p60
        $region46: #{calayer_mixab_pallas.1} parent=43 // pred_check_branch
          %229 = sbr.rel (%p227) target = $region48
        $region47: #{calayer_mixab_pallas.1} parent=43 // pred_region
          %230 = dma.done [#allocation3], 16
        $region48: #{calayer_mixab_pallas.1} parent=43 // pred_fallthru
          _
        %231 = sfence
        %p232 = scmp.lt.s32.totalorder %s18, 1
        %s233 = scalar_select %p232, %s18, 1
        %s234 = smul.addr %s233, 8
        %s235 = smul.addr %s234, 8
        %s236 = scalar_lea.vmem %s0, %s235
        %p237 = pneg %p39
        %p238 = pneg %p36
        %p239 = pneg %p60
        %p240 = pneg %p57
        %p241 = pneg %p81
        %p242 = pneg %p78
        %p243 = pneg %p102
        %p244 = pneg %p99
        %p245 = pneg %p123
        %p246 = pneg %p120
        %p247 = pneg %p144
        %p248 = pneg %p141
        %p249 = pneg %p170
        %p250 = pneg %p167
        %p251 = scmp.lt.s32.totalorder %s18, 1
        %s252 = scalar_select %p251, %s18, 1
        %s253 = smul.addr %s252, 8
        %s254 = smul.addr %s253, 8
        %s255 = scalar_lea.vmem %s6, %s254
        %p256 = scmp.lt.s32.totalorder %s18, 1
        %s257 = scalar_select %p256, %s18, 1
        %s258 = smul.addr %s257, 8
        %s259 = smul.addr %s258, 8
        %s260 = scalar_lea.vmem %s0, %s259
        %p261 = scmp.lt.s32.totalorder %s18, 1
        %s262 = scalar_select %p261, %s18, 1
        %s263 = smul.addr %s262, 8
        %s264 = smul.addr %s263, 8
        %s265 = scalar_lea.vmem %s6, %s264
        %v266 = vld [vmem:[%s260] sm:$0xff]
        %v267 = vld [vmem:[%s260 + $0x8] sm:$0xff]
        %v268 = vld [vmem:[%s260 + $0x10] sm:$0xff]
        %v269 = vld [vmem:[%s260 + $0x18] sm:$0xff]
        %v270 = vld [vmem:[%s260 + $0x20] sm:$0xff]
        %v271 = vld [vmem:[%s260 + $0x28] sm:$0xff]
        %v272 = vld [vmem:[%s260 + $0x30] sm:$0xff]
        %v273 = vld [vmem:[%s260 + $0x38] sm:$0xff]
        %v274 = vadd.f32 %v266, %v267
        %275 = vadd.xlane.f32.xlu0 %v274
        %v276 = vpop.xlane.xlu0 %275
        %v277 = vadd.f32 %v268, %v269
        %278 = vadd.xlane.f32.xlu0 %v277
        %v279 = vpop.xlane.xlu0 %278
        %v280 = vadd.f32 %v270, %v271
        %281 = vadd.xlane.f32.xlu0 %v280
        %v282 = vpop.xlane.xlu0 %281
        %v283 = vadd.f32 %v272, %v273
        %284 = vadd.xlane.f32.xlu0 %v283
        %v285 = vpop.xlane.xlu0 %284
        %v286 = vmax.f32 %v266, %v267
        %287 = vmax.xlane.f32.xlu0 %v286
        %v288 = vpop.xlane.xlu0 %287
        %v289 = vmax.f32 %v268, %v269
        %290 = vmax.xlane.f32.xlu0 %v289
        %v291 = vpop.xlane.xlu0 %290
        %v292 = vmax.f32 %v270, %v271
        %293 = vmax.xlane.f32.xlu0 %v292
        %v294 = vpop.xlane.xlu0 %293
        %v295 = vmax.f32 %v272, %v273
        %296 = vmax.xlane.f32.xlu0 %v295
        %v297 = vpop.xlane.xlu0 %296
        %s298 = sld [smem:[#allocation2]]
        %s299 = sld [smem:[#allocation2 + $0x1]]
        %v300 = vld [vmem:[%s2] sm:$0xff]
        %v301 = vld [vmem:[%s2 + $0x8] sm:$0xff]
        %v302 = vld [vmem:[%s2 + $0x10] sm:$0xff]
        %v303 = vld [vmem:[%s2 + $0x18] sm:$0xff]
        %v304 = vld [vmem:[%s3] sm:$0x1]
        %v305 = vld [vmem:[%s4] sm:$0xff]
        %v306 = vld [vmem:[%s4 + $0x8] sm:$0xff]
        %v307 = vld [vmem:[%s4 + $0x10] sm:$0xff]
        %v308 = vld [vmem:[%s4 + $0x18] sm:$0xff]
        %v309 = vld [vmem:[%s5] sm:$0xff]
        %v310 = vld [vmem:[%s5 + $0x8] sm:$0xff]
        %v311 = vld [vmem:[%s5 + $0x10] sm:$0xff]
        %v312 = vld [vmem:[%s5 + $0x18] sm:$0xff]
        %v313 = vmul.f32 %v276, 0.00390625
        %v314 = vmul.f32 %v279, 0.00390625
        %v315 = vmul.f32 %v282, 0.00390625
        %v316 = vmul.f32 %v285, 0.00390625
        %v317 = vstv %s298
        %v318 = vmul.f32 %v317, %v313
        %v319 = vmul.f32 %v317, %v314
        %v320 = vmul.f32 %v317, %v315
        %v321 = vmul.f32 %v317, %v316
        %v322 = vstv %s299
        %v323 = vmul.f32 %v322, %v288
        %v324 = vmul.f32 %v322, %v291
        %v325 = vmul.f32 %v322, %v294
        %v326 = vmul.f32 %v322, %v297
        %v327 = vadd.f32 %v318, %v323
        %v328 = vadd.f32 %v319, %v324
        %v329 = vadd.f32 %v320, %v325
        %v330 = vadd.f32 %v321, %v326
        %v331 = vmul.f32 %v300, %v327
        %v332 = vmul.f32 %v301, %v328
        %v333 = vmul.f32 %v302, %v329
        %v334 = vmul.f32 %v303, %v330
        %vm335 = vcmask 15360
        %v336 = vsel %vm335, %v331, 0.0
        %v337 = vsel %vm335, %v332, 0.0
        %v338 = vadd.f32 %v336, %v337
        %v339 = vsel %vm335, %v333, 0.0
        %v340 = vadd.f32 %v338, %v339
        %v341 = vsel %vm335, %v334, 0.0
        %v342 = vadd.f32 %v340, %v341
        %v343 = vrot.slane %v342, 4
        %v344 = vadd.f32 %v342, %v343
        %v345 = vrot.slane %v344, 2
        %v346 = vadd.f32 %v344, %v345
        %v347 = vrot.slane %v346, 1
        %v348 = vadd.f32 %v346, %v347
        %v349 = vadd.f32 %v348, %v304
        %v350 = vmax.f32 %v349, 0.0
        %v351 = vlaneseq
        %v352 = vshrl.u32 %v351, 7
        %v353 = vsub.s32 0, %v352
        %v354 = vrot.slane %v350, %v353
        %v355 = vmul.f32 %v305, %v354
        %v356 = vmul.f32 %v306, %v354
        %v357 = vmul.f32 %v307, %v354
        %v358 = vmul.f32 %v308, %v354
        %v359 = vsel %vm335, %v355, 0.0
        %360 = vadd.xlane.f32.xlu0 %v359
        %v361 = vpop.xlane.xlu0 %360
        %v362 = vsel %vm335, %v356, 0.0
        %363 = vadd.xlane.f32.xlu0 %v362
        %v364 = vpop.xlane.xlu0 %363
        %v365 = vsel %vm335, %v357, 0.0
        %366 = vadd.xlane.f32.xlu0 %v365
        %v367 = vpop.xlane.xlu0 %366
        %v368 = vsel %vm335, %v358, 0.0
        %369 = vadd.xlane.f32.xlu0 %v368
        %v370 = vpop.xlane.xlu0 %369
        %v371 = vadd.f32 %v361, %v309
        %v372 = vadd.f32 %v364, %v310
        %v373 = vadd.f32 %v367, %v311
        %v374 = vadd.f32 %v370, %v312
        %v375 = vsub.f32 0.0, %v371
        %v376 = vsub.f32 0.0, %v372
        %v377 = vsub.f32 0.0, %v373
        %v378 = vsub.f32 0.0, %v374
        %v379 = vmul.f32 %v375, 1.442695
        %v380 = vpow.pop %v379
        %v381 = vmul.f32 %v376, 1.442695
        %v382 = vpow.pop %v381
        %v383 = vmul.f32 %v377, 1.442695
        %v384 = vpow.pop %v383
        %v385 = vmul.f32 %v378, 1.442695
        %v386 = vpow.pop %v385
        %v387 = vadd.f32 %v380, 1.0
        %v388 = vadd.f32 %v382, 1.0
        %v389 = vadd.f32 %v384, 1.0
        %v390 = vadd.f32 %v386, 1.0
        %v391 = vrcp.pop %v387
        %v392 = vmul.f32 1.0, %v391
        %v393 = vrcp.pop %v388
        %v394 = vmul.f32 1.0, %v393
        %v395 = vrcp.pop %v389
        %v396 = vmul.f32 1.0, %v395
        %v397 = vrcp.pop %v390
        %v398 = vmul.f32 1.0, %v397
        %400 = vset.pattern.permute.xlu0 0
        %401 = vperm.xlu0 %400, %v392
        %v402 = vpop.permute.xlu0 %401
        %405 = vset.pattern.permute.xlu0 0
        %406 = vperm.xlu0 %405, %v394
        %v407 = vpop.permute.xlu0 %406
        %410 = vset.pattern.permute.xlu0 0
        %411 = vperm.xlu0 %410, %v396
        %v412 = vpop.permute.xlu0 %411
        %415 = vset.pattern.permute.xlu0 0
        %416 = vperm.xlu0 %415, %v398
        %v417 = vpop.permute.xlu0 %416
        %v419 = vmul.f32 %v266, %v402
        %v420 = vmul.f32 %v267, %v402
        %v421 = vmul.f32 %v268, %v407
        %v422 = vmul.f32 %v269, %v407
        %v423 = vmul.f32 %v270, %v412
        %v424 = vmul.f32 %v271, %v412
        %v425 = vmul.f32 %v272, %v417
        %v426 = vmul.f32 %v273, %v417
        %427 = vst [vmem:[%s265] sm:$0xff] %v419
        %428 = vst [vmem:[%s265 + $0x8] sm:$0xff] %v420
        %429 = vst [vmem:[%s265 + $0x10] sm:$0xff] %v421
        %430 = vst [vmem:[%s265 + $0x18] sm:$0xff] %v422
        %431 = vst [vmem:[%s265 + $0x20] sm:$0xff] %v423
        %432 = vst [vmem:[%s265 + $0x28] sm:$0xff] %v424
        %433 = vst [vmem:[%s265 + $0x30] sm:$0xff] %v425
        %434 = vst [vmem:[%s265 + $0x38] sm:$0xff] %v426
        %p435 = scmp.lt.s32.totalorder %s18, 1
        %s436 = scalar_select %p435, %s18, 1
        %s437 = smul.addr %s436, 8
        %s438 = smul.addr %s437, 8
        %s439 = scalar_lea.vmem %s6, %s438
        // Predicated region
        $region49: #{calayer_mixab_pallas.1} parent=43 // pred_check
          %p440 = pneg %p167
        $region50: #{calayer_mixab_pallas.1} parent=43 // pred_check_branch
          %442 = sbr.rel (%p440) target = $region52
        $region51: #{calayer_mixab_pallas.1} parent=43 // pred_region
          _
        $region52: #{calayer_mixab_pallas.1} parent=43 // pred_fallthru
          _
      $region44: #{calayer_mixab_pallas.1} parent=5 // pred_fallthru
        _
      %p443 = scmp.le.s32.totalorder 2, %s13
      // Predicated region
      $region53: #{calayer_mixab_pallas.1} parent=5 // pred_check
        %p444 = pneg %p443
      $region54: #{calayer_mixab_pallas.1} parent=5 // pred_check_branch
        %446 = sbr.rel (%p444) target = $region56
      $region55: #{calayer_mixab_pallas.1} parent=5 // pred_region
        %s447 = ssub.s32 %s13, 2
        // Predicated region
        $region57: #{calayer_mixab_pallas.1} parent=55 // pred_check
          %p448 = pneg %p173
        $region58: #{calayer_mixab_pallas.1} parent=55 // pred_check_branch
          %450 = sbr.rel (%p448) target = $region60
        $region59: #{calayer_mixab_pallas.1} parent=55 // pred_region
          %p451 = scmp.lt.s32.totalorder %s19, 1
          %s452 = scalar_select %p451, %s19, 1
          %s453 = smul.addr %s452, 8
          %s454 = smul.addr %s453, 8
          %s455 = scalar_lea.vmem %s6, %s454
        $region60: #{calayer_mixab_pallas.1} parent=55 // pred_fallthru
          _
      $region56: #{calayer_mixab_pallas.1} parent=5 // pred_fallthru
        _
    $region6: #{calayer_mixab_pallas.1} parent=1 // loop_footer
      %s17 = sadd.s32 1, %s13
    $region7: #{calayer_mixab_pallas.1} parent=1 // loop_footer_branch
      %12 = sbr.rel target = $region3
    $region8: #{calayer_mixab_pallas.1} parent=1 // loop_exit
      _
    %456 = vsyncpa [#allocation3], 1
    %s457 = scalar_lea.sflag [#allocation3], 1
    %458 = vsyncpa %s457, 1

</llo_original>
